<compile_context>
chip_gen: v5e
topology: v5e:2x2
jax: 0.10.0
libtpu: 0.0.40
codegen_flags: <defaults>
</compile_context>

<pallas_src>
import functools
import math

import jax
import jax.numpy as jnp
from jax import lax
from jax.experimental import pallas as pl
from jax.experimental.pallas import tpu as pltpu


def _linear_gelu_kernel(x_ref, w_ref, b_ref, o_ref, acc_ref, *,
                        compute_dtype, approximate_gelu):
    k = pl.program_id(2)

    @pl.when(k == 0)
    def _():
        acc_ref[...] = jnp.zeros_like(acc_ref)

    x = x_ref[...]
    w = w_ref[...]
    if compute_dtype is not None:
        x = x.astype(compute_dtype)
        w = w.astype(compute_dtype)
    # Partial matmul on the MXU, accumulate in f32.
    acc_ref[...] += jnp.dot(x, w, preferred_element_type=jnp.float32)

    @pl.when(k == pl.num_programs(2) - 1)
    def _():
        # Epilogue (last K step only): bias + GELU, kept in f32 until the cast.
        y = acc_ref[...] + b_ref[...].astype(jnp.float32)
        if approximate_gelu:
            g = jax.nn.gelu(y, approximate=True)      # tanh -> EUP slot
        else:
            # Exact GELU, matches torch.nn.GELU default: 0.5*x*(1+erf(x/sqrt(2))).
            g = 0.5 * y * (1.0 + lax.erf(y * (1.0 / math.sqrt(2.0))))
        o_ref[...] = g.astype(o_ref.dtype)


def _round_up(x, m):
    return ((x + m - 1) // m) * m


def _largest_div_tile(total128, target):
    """Largest multiple of 128 that divides total128 (a 128-multiple) and is <= target."""
    target = max(128, min(target, total128))
    best = 128
    t = 128
    while t <= target:
        if total128 % t == 0:
            best = t
        t += 128
    return best


def linear_with_act(x, weight, bias, *, tm=None, tn=None, tk=None,
                    compute_dtype=None, approximate_gelu=False):
    """x: (B, n_in), weight: (n_in, n_out), bias: (n_out,) -> (B, n_out)."""
    B, n_in = x.shape
    n_in_w, n_out = weight.shape
    assert n_in == n_in_w
    assert bias.shape == (n_out,)

    out_dtype = x.dtype
    x_it = jnp.dtype(x.dtype).itemsize
    w_it = jnp.dtype(weight.dtype).itemsize
    b_it = jnp.dtype(bias.dtype).itemsize
    out_it = jnp.dtype(out_dtype).itemsize

    # Dtype-aware sublane alignment for the row (M) dimension.
    sub = {4: 8, 2: 16, 1: 32}.get(x_it, 8)

    # Per-generation VMEM budget (v5e/v6e: 128 MiB; v7x: 64 MiB per TC).
    try:
        vmem_cap = int(pltpu.get_tpu_info().vmem_capacity_bytes)
    except Exception:
        vmem_cap = 64 << 20  # conservative fallback (v7x-sized)
    budget = (3 * vmem_cap) // 4
    small_vmem = vmem_cap <= (96 << 20)  # v7x-class: 2 TCs, 64 MiB VMEM each

    K128 = _round_up(n_in, 128)
    N128 = _round_up(n_out, 128)
    B_sub = _round_up(B, sub)

    def ws_bytes(tm_, tn_, tk_):
        # Double-buffered x / w / bias / out tiles + single f32 accumulator.
        return (2 * tm_ * tk_ * x_it + 2 * tk_ * tn_ * w_it + 2 * tn_ * b_it
                + 2 * tm_ * tn_ * out_it + tm_ * tn_ * 4)

    auto_tm, auto_tn, auto_tk = tm is None, tn is None, tk is None
    if auto_tm:
        # Read the weight exactly once when B is small-to-moderate.
        tm = B_sub if B_sub <= 1024 else 512
    if auto_tn:
        tn = _largest_div_tile(N128, 1024)
    if auto_tk:
        tk = _largest_div_tile(K128, 2048)

    # Shrink (K first, then N, then M) until the working set fits the budget.
    while ws_bytes(tm, tn, tk) > budget:
        if auto_tk and tk > 128:
            tk = _largest_div_tile(K128, tk // 2)
        elif auto_tn and tn > 128:
            tn = _largest_div_tile(N128, tn // 2)
        elif auto_tm and tm > sub:
            tm = max(sub, _round_up(max(tm // 2, 1), sub))
        else:
            break

    # v7x has 2 TensorCores: make sure there are >= 2 (i, j) blocks to shard.
    if small_vmem:
        m_blocks = _round_up(B_sub, tm) // tm
        n_blocks = _round_up(N128, tn) // tn
        if m_blocks * n_blocks < 2:
            if auto_tn and N128 >= 256:
                tn = _largest_div_tile(N128, N128 // 2)
            elif auto_tm and B_sub >= 2 * sub:
                tm = _round_up((B_sub + 1) // 2, sub)

    M = _round_up(B, tm)
    N = _round_up(n_out, tn)
    K = _round_up(n_in, tk)

    # Zero-pad only when tiles don't divide (common case: no weight/x pad).
    # Zero K-padding contributes 0 to the matmul; padded N columns produce
    # GELU(bias=0)=0 and are sliced off below.
    x_p = x if (M == B and K == n_in) else jnp.pad(x, ((0, M - B), (0, K - n_in)))
    w_p = (weight if (K == n_in and N == n_out)
           else jnp.pad(weight, ((0, K - n_in), (0, N - n_out))))
    b_p = bias if N == n_out else jnp.pad(bias, (0, N - n_out))
    b2 = b_p.reshape(1, N)

    grid = (M // tm, N // tn, K // tk)

    vmem_need = ws_bytes(tm, tn, tk)
    vmem_limit = int(min(max(vmem_need + (4 << 20), 32 << 20),
                         vmem_cap - (4 << 20)))

    cost = pl.CostEstimate(
        flops=2 * M * N * K,
        transcendentals=M * N,
        bytes_accessed=(M * K * x_it + K * N * w_it + N * b_it
                        + M * N * out_it),
    )

    kernel = functools.partial(_linear_gelu_kernel,
                               compute_dtype=compute_dtype,
                               approximate_gelu=approximate_gelu)

    out_padded = pl.pallas_call(
        kernel,
        out_shape=jax.ShapeDtypeStruct((M, N), out_dtype),
        grid_spec=pltpu.PrefetchScalarGridSpec(
            num_scalar_prefetch=0,
            grid=grid,
            in_specs=[
                pl.BlockSpec((tm, tk), lambda i, j, k: (i, k)),
                pl.BlockSpec((tk, tn), lambda i, j, k: (k, j)),
                pl.BlockSpec((1, tn), lambda i, j, k: (0, j)),
            ],
            out_specs=pl.BlockSpec((tm, tn), lambda i, j, k: (i, j)),
            scratch_shapes=[pltpu.VMEM((tm, tn), jnp.float32)],
        ),
        compiler_params=pltpu.CompilerParams(
            dimension_semantics=("parallel", "parallel", "arbitrary"),
            vmem_limit_bytes=vmem_limit,
        ),
        cost_estimate=cost,
    )(x_p, w_p, b2)

    if M == B and N == n_out:
        return out_padded
    return out_padded[:B, :n_out]


if __name__ == "__main__":
    key = jax.random.PRNGKey(0)
    k_x, k_w, k_b = jax.random.split(key, 3)

    # Test 1: small shapes consistent with nn.Linear(n_in, n_out), auto tiles
    # (exercises the padding path: n_in=32 / n_out=64 are below 128).
    B, n_in, n_out = 8, 32, 64
    x = jax.random.normal(k_x, (B, n_in), dtype=jnp.float32)
    bound = 1.0 / math.sqrt(n_in)
    weight = jax.random.uniform(k_w, (n_in, n_out), jnp.float32, -bound, bound)
    bias = jax.random.uniform(k_b, (n_out,), jnp.float32, -bound, bound)

    out = linear_with_act(x, weight, bias)
    out = jax.block_until_ready(out)
    ref = jax.nn.gelu(x @ weight + bias, approximate=False)
    assert out.shape == (B, n_out)
    assert jnp.allclose(out, ref, atol=1e-5, rtol=1e-5)

    # Test 2: explicit small tiles forcing a multi-step (M, N, K) grid to
    # exercise the accumulator init / last-K epilogue path.
    k_x2, k_w2, k_b2 = jax.random.split(jax.random.PRNGKey(1), 3)
    B2, n_in2, n_out2 = 48, 384, 256
    x2 = jax.random.normal(k_x2, (B2, n_in2), dtype=jnp.float32)
    bound2 = 1.0 / math.sqrt(n_in2)
    w2 = jax.random.uniform(k_w2, (n_in2, n_out2), jnp.float32, -bound2, bound2)
    b2 = jax.random.uniform(k_b2, (n_out2,), jnp.float32, -bound2, bound2)

    out2 = linear_with_act(x2, w2, b2, tm=32, tn=128, tk=128)  # grid (2, 2, 3)
    out2 = jax.block_until_ready(out2)
    ref2 = jax.nn.gelu(x2 @ w2 + b2, approximate=False)
    assert out2.shape == (B2, n_out2)
    assert jnp.allclose(out2, ref2, atol=1e-4, rtol=1e-4)

    # Test 3: 128-multiple shapes with auto tile selection (no-padding path,
    # tm = padded batch so the weight is streamed exactly once).
    k_x3, k_w3, k_b3 = jax.random.split(jax.random.PRNGKey(2), 3)
    B3, n_in3, n_out3 = 128, 512, 384
    x3 = jax.random.normal(k_x3, (B3, n_in3), dtype=jnp.float32)
    bound3 = 1.0 / math.sqrt(n_in3)
    w3 = jax.random.uniform(k_w3, (n_in3, n_out3), jnp.float32, -bound3, bound3)
    b3 = jax.random.uniform(k_b3, (n_out3,), jnp.float32, -bound3, bound3)

    out3 = linear_with_act(x3, w3, b3)
    out3 = jax.block_until_ready(out3)
    ref3 = jax.nn.gelu(x3 @ w3 + b3, approximate=False)
    assert out3.shape == (B3, n_out3)
    assert jnp.allclose(out3, ref3, atol=1e-4, rtol=1e-4)

    print("KERNEL_OK")
</pallas_src>

<mosaic_0001>
module attributes {stable_mosaic.version = 11 : i64} {
  func.func @_linear_gelu_kernel(%arg0: i32, %arg1: i32, %arg2: i32, %arg3: memref<8x128xf32, #tpu.memory_space<vmem>>, %arg4: memref<128x128xf32, #tpu.memory_space<vmem>>, %arg5: memref<1x128xf32, #tpu.memory_space<vmem>>, %arg6: memref<8x128xf32, #tpu.memory_space<vmem>>, %arg7: memref<8x128xf32, #tpu.memory_space<vmem>>) attributes {dimension_semantics = [#tpu.dimension_semantics<parallel>, #tpu.dimension_semantics<parallel>, #tpu.dimension_semantics<arbitrary>], iteration_bounds = array<i64: 1, 1, 1>, scalar_prefetch = 0 : i64, scratch_operands = 1 : i64, tpu.core_type = #tpu.core_type<tc>, window_params = [{transform_indices = @transform_0, window_bounds = array<i64: 8, 128>}, {transform_indices = @transform_1, window_bounds = array<i64: 128, 128>}, {transform_indices = @transform_2, window_bounds = array<i64: 1, 128>}, {transform_indices = @transform_3, window_bounds = array<i64: 8, 128>}]} {
    %c0_i32 = arith.constant 0 : i32
    %0 = arith.cmpi eq, %arg2, %c0_i32 : i32
    %1 = arith.extui %0 : i1 to i32
    %c0_i32_0 = arith.constant 0 : i32
    %2 = arith.cmpi ne, %1, %c0_i32_0 : i32
    scf.if %2 {
      %cst_10 = arith.constant 0.000000e+00 : f32
      %12 = vector.broadcast %cst_10 : f32 to vector<8x128xf32>
      %c0_11 = arith.constant 0 : index
      %c0_12 = arith.constant 0 : index
      %13 = vector.load %arg7[%c0_11, %c0_12] : memref<8x128xf32, #tpu.memory_space<vmem>>, vector<8x128xf32>
      tpu.vector_store %arg7[%c0_11, %c0_12], %12 {strides = array<i32>} : memref<8x128xf32, #tpu.memory_space<vmem>>, vector<8x128xf32>,
    } else {
    }
    %c0 = arith.constant 0 : index
    %c0_1 = arith.constant 0 : index
    %3 = vector.load %arg3[%c0, %c0_1] : memref<8x128xf32, #tpu.memory_space<vmem>>, vector<8x128xf32>
    %c0_2 = arith.constant 0 : index
    %c0_3 = arith.constant 0 : index
    %4 = vector.load %arg4[%c0_2, %c0_3] : memref<128x128xf32, #tpu.memory_space<vmem>>, vector<128x128xf32>
    %c0_4 = arith.constant 0 : index
    %c0_5 = arith.constant 0 : index
    %5 = vector.load %arg7[%c0_4, %c0_5] : memref<8x128xf32, #tpu.memory_space<vmem>>, vector<8x128xf32>
    %cst = arith.constant dense<0.000000e+00> : vector<8x128xf32>
    %6 = tpu.matmul %3, %4, %cst {dimension_numbers = #tpu.dot_dimension_numbers<[1], [0], [0], [1], [0, 0, 1, 1], [], []>} : vector<8x128xf32>, vector<128x128xf32>, vector<8x128xf32> -> vector<8x128xf32>
    %7 = arith.addf %5, %6 : vector<8x128xf32>
    %c0_6 = arith.constant 0 : index
    %c0_7 = arith.constant 0 : index
    %8 = vector.load %arg7[%c0_6, %c0_7] : memref<8x128xf32, #tpu.memory_space<vmem>>, vector<8x128xf32>
    tpu.vector_store %arg7[%c0_6, %c0_7], %7 {strides = array<i32>} : memref<8x128xf32, #tpu.memory_space<vmem>>, vector<8x128xf32>,
    %c0_i32_8 = arith.constant 0 : i32
    %9 = arith.cmpi eq, %arg2, %c0_i32_8 : i32
    %10 = arith.extui %9 : i1 to i32
    %c0_i32_9 = arith.constant 0 : i32
    %11 = arith.cmpi ne, %10, %c0_i32_9 : i32
    scf.if %11 {
      %c0_10 = arith.constant 0 : index
      %c0_11 = arith.constant 0 : index
      %12 = vector.load %arg7[%c0_10, %c0_11] : memref<8x128xf32, #tpu.memory_space<vmem>>, vector<8x128xf32>
      %c0_12 = arith.constant 0 : index
      %c0_13 = arith.constant 0 : index
      %13 = vector.load %arg5[%c0_12, %c0_13] : memref<1x128xf32, #tpu.memory_space<vmem>>, vector<1x128xf32>
      %14 = vector.broadcast %13 : vector<1x128xf32> to vector<8x128xf32>
      %15 = arith.addf %12, %14 : vector<8x128xf32>
      %cst_14 = arith.constant 5.000000e-01 : f32
      %16 = vector.broadcast %cst_14 : f32 to vector<8x128xf32>
      %17 = arith.mulf %16, %15 : vector<8x128xf32>
      %cst_15 = arith.constant 0.707106769 : f32
      %18 = vector.broadcast %cst_15 : f32 to vector<8x128xf32>
      %19 = arith.mulf %15, %18 : vector<8x128xf32>
      %20 = math.erf %19 : vector<8x128xf32>
      %cst_16 = arith.constant 1.000000e+00 : f32
      %21 = vector.broadcast %cst_16 : f32 to vector<8x128xf32>
      %22 = arith.addf %21, %20 : vector<8x128xf32>
      %23 = arith.mulf %17, %22 : vector<8x128xf32>
      %c0_17 = arith.constant 0 : index
      %c0_18 = arith.constant 0 : index
      %24 = vector.load %arg6[%c0_17, %c0_18] : memref<8x128xf32, #tpu.memory_space<vmem>>, vector<8x128xf32>
      tpu.vector_store %arg6[%c0_17, %c0_18], %23 {strides = array<i32>} : memref<8x128xf32, #tpu.memory_space<vmem>>, vector<8x128xf32>,
    } else {
    }
    return
  }
  func.func @transform_0(%arg0: i32, %arg1: i32, %arg2: i32) -> (i32, i32) {
    %c0_i32 = arith.constant 0 : i32
    return %arg0, %arg2 : i32, i32
  }
  func.func @transform_1(%arg0: i32, %arg1: i32, %arg2: i32) -> (i32, i32) {
    %c0_i32 = arith.constant 0 : i32
    return %arg2, %arg1 : i32, i32
  }
  func.func @transform_2(%arg0: i32, %arg1: i32, %arg2: i32) -> (i32, i32) {
    %c0_i32 = arith.constant 0 : i32
    %c0_i32_0 = arith.constant 0 : i32
    return %c0_i32, %arg1 : i32, i32
  }
  func.func @transform_3(%arg0: i32, %arg1: i32, %arg2: i32) -> (i32, i32) {
    %c0_i32 = arith.constant 0 : i32
    return %arg0, %arg1 : i32, i32
  }
}

</mosaic_0001>

<llo_original>
// kernel: tpu_custom_call.1
$region0: #{tpu_custom_call.1}
  #allocation0 [shape = 'u32[]', space=smem, size = 0x4, offset = 0x4, fixed_abs, tag = 'smem constant byte address 0x4 - core index']
  #allocation1 [shape = 'u32[72,128]{1,0:T(1,128)}', space=vmem, size = 0x9000, scoped, tag = 'internal scratch']
  #allocation2 [shape = 'f32[8,128]{1,0:T(8,128)}', space=vmem, size = 0x1000, scoped, tag = 'scratch operand']
  %s0 = inlined_call_operand.hbm [shape: f32[8,128], index: 0, kind: input, shape index: {}]
  %s1 = inlined_call_operand.hbm [shape: f32[128,128], index: 1, kind: input, shape index: {}]
  %s2 = inlined_call_operand.vmem [shape: f32[1,128], index: 2, kind: input, shape index: {}]
  %s3 = inlined_call_operand.hbm [shape: f32[8,128], index: 3, kind: output, shape index: {}]
  %s4 = sld [smem:[#allocation0]]
  $region38: #{tpu_custom_call.1} parent=0
    _
  %s6 = ssub.s32 1, %s4
  %s7 = scalar_select 0, %s6, %s4
  $region1: #{tpu_custom_call.1} parent=0
    #allocation3 [shape = 'u8[4096]{0}', space=vmem, size = 0x1000, scoped, tag = 'input window, operand 0, single buffered']
    #allocation4 [shape = 's32[1]{0}', space=sflag, size = 0x4, scoped, tag = 'scoped memory for tpu_custom_call.1']
    #allocation5 [shape = 's32[1]{0}', space=sflag, size = 0x4, scoped, tag = 'scoped memory for tpu_custom_call.1']
    #allocation6 [shape = 'u8[65536]{0}', space=vmem, size = 0x10000, scoped, tag = 'input window, operand 1, single buffered']
    #allocation7 [shape = 's32[1]{0}', space=sflag, size = 0x4, scoped, tag = 'scoped memory for tpu_custom_call.1']
    #allocation8 [shape = 'u8[4096]{0}', space=vmem, size = 0x1000, scoped, tag = 'output window, operand 0, single buffered']
    %8 = vsyncpa [#allocation4], 0
    %9 = vsyncpa [#allocation7], 0
    %10 = vsyncpa [#allocation5], 0
    // Predicated region
    $region2: #{tpu_custom_call.1} parent=1 // pred_check
      _
    $region3: #{tpu_custom_call.1} parent=1 // pred_check_branch
      %12 = sbr.rel (0) target = $region5
    $region4: #{tpu_custom_call.1} parent=1 // pred_region
      %14 = vsyncadd [#allocation4], 0
      %s16 = sshll.u32 %s0, 4
      %s17 = int_to_ptr.hbm [resolvable:$true] %s16
      %s18 = sshll.u32 [#allocation3], 4
      %s19 = int_to_ptr.vmem [resolvable:$true] %s18
      %21 = dma.hbm_to_vmem [thread:$0]  %s17, 128, %s19, [#allocation4]
    $region5: #{tpu_custom_call.1} parent=1 // pred_fallthru
      _
    // Predicated region
    $region6: #{tpu_custom_call.1} parent=1 // pred_check
      _
    $region7: #{tpu_custom_call.1} parent=1 // pred_check_branch
      %23 = sbr.rel (0) target = $region9
    $region8: #{tpu_custom_call.1} parent=1 // pred_region
      %25 = vsyncadd [#allocation7], 0
      %s26 = sshll.u32 %s1, 4
      %s27 = int_to_ptr.hbm [resolvable:$true] %s26
      %s28 = sshll.u32 [#allocation6], 4
      %s29 = int_to_ptr.vmem [resolvable:$true] %s28
      %34 = dma.hbm_to_vmem [thread:$0]  %s27, 2048, %s29, [#allocation7], 128, 128, 8
    $region9: #{tpu_custom_call.1} parent=1 // pred_fallthru
      _
    // Predicated region
    $region10: #{tpu_custom_call.1} parent=1 // pred_check
      _
    $region11: #{tpu_custom_call.1} parent=1 // pred_check_branch
      %36 = sbr.rel (0) target = $region13
    $region12: #{tpu_custom_call.1} parent=1 // pred_region
      _
    $region13: #{tpu_custom_call.1} parent=1 // pred_fallthru
      _
    // Predicated region
    $region14: #{tpu_custom_call.1} parent=1 // pred_check
      _
    $region15: #{tpu_custom_call.1} parent=1 // pred_check_branch
      %38 = sbr.rel (0) target = $region17
    $region16: #{tpu_custom_call.1} parent=1 // pred_region
      %40 = dma.done [#allocation4], 128
    $region17: #{tpu_custom_call.1} parent=1 // pred_fallthru
      _
    // Predicated region
    $region18: #{tpu_custom_call.1} parent=1 // pred_check
      _
    $region19: #{tpu_custom_call.1} parent=1 // pred_check_branch
      %42 = sbr.rel (0) target = $region21
    $region20: #{tpu_custom_call.1} parent=1 // pred_region
      %44 = dma.done [#allocation7], 2048
    $region21: #{tpu_custom_call.1} parent=1 // pred_fallthru
      _
    %p45 = scmp.eq.s32.totalorder 0, 0
    // Predicated region
    $region22: #{tpu_custom_call.1} parent=1 // pred_check
      %p46 = pneg %p45
    $region23: #{tpu_custom_call.1} parent=1 // pred_check_branch
      %48 = sbr.rel (%p46) target = $region25
    $region24: #{tpu_custom_call.1} parent=1 // pred_region
      %49 = vst [vmem:[#allocation2] sm:$0xff] 0.0
    $region25: #{tpu_custom_call.1} parent=1 // pred_fallthru
      _
    %v50 = vld [vmem:[#allocation3] sm:$0xff]
    %v51 = vld [vmem:[#allocation6] sm:$0xff]
    %v52 = vld [vmem:[#allocation6 + $0x8] sm:$0xff]
    %v53 = vld [vmem:[#allocation6 + $0x10] sm:$0xff]
    %v54 = vld [vmem:[#allocation6 + $0x18] sm:$0xff]
    %v55 = vld [vmem:[#allocation6 + $0x20] sm:$0xff]
    %v56 = vld [vmem:[#allocation6 + $0x28] sm:$0xff]
    %v57 = vld [vmem:[#allocation6 + $0x30] sm:$0xff]
    %v58 = vld [vmem:[#allocation6 + $0x38] sm:$0xff]
    %v59 = vld [vmem:[#allocation6 + $0x40] sm:$0xff]
    %v60 = vld [vmem:[#allocation6 + $0x48] sm:$0xff]
    %v61 = vld [vmem:[#allocation6 + $0x50] sm:$0xff]
    %v62 = vld [vmem:[#allocation6 + $0x58] sm:$0xff]
    %v63 = vld [vmem:[#allocation6 + $0x60] sm:$0xff]
    %v64 = vld [vmem:[#allocation6 + $0x68] sm:$0xff]
    %v65 = vld [vmem:[#allocation6 + $0x70] sm:$0xff]
    %v66 = vld [vmem:[#allocation6 + $0x78] sm:$0xff]
    %v67 = vld [vmem:[#allocation2] sm:$0xff]
    %68 = vmatpush.msra.mxu0 %v66
    %69 = vmatpush.msra.mxu0 %v65
    %70 = vmatpush.msra.mxu0 %v64
    %71 = vmatpush.msra.mxu0 %v63
    %72 = vmatpush.msra.mxu0 %v62
    %73 = vmatpush.msra.mxu0 %v61
    %74 = vmatpush.msra.mxu0 %v60
    %75 = vmatpush.msra.mxu0 %v59
    %76 = vmatpush.msra.mxu0 %v58
    %77 = vmatpush.msra.mxu0 %v57
    %78 = vmatpush.msra.mxu0 %v56
    %79 = vmatpush.msra.mxu0 %v55
    %80 = vmatpush.msra.mxu0 %v54
    %81 = vmatpush.msra.mxu0 %v53
    %82 = vmatpush.msra.mxu0 %v52
    %83 = vmatpush.msra.mxu0 %v51
    %84 = vmatmul.f32.gmra.mxu0 %v50
    %v85 = vpop.f32.mrf.mxu0
    %v86 = vadd.f32 0.0, %v85
    %87 = vdwg.mxu0
    %v88 = vadd.f32 %v67, %v86
    %89 = vst [vmem:[#allocation2] sm:$0xff] %v88
    // Predicated region
    $region26: #{tpu_custom_call.1} parent=1 // pred_check
      %p90 = pneg %p45
    $region27: #{tpu_custom_call.1} parent=1 // pred_check_branch
      %92 = sbr.rel (%p90) target = $region29
    $region28: #{tpu_custom_call.1} parent=1 // pred_region
      %v93 = vld [vmem:[#allocation2] sm:$0xff]
      %v94 = vld [vmem:[%s2] sm:$0x1]
      %v96 = vperm.slane %v94, 0
      %v98 = vadd.f32 %v93, %v96
      %v99 = vmul.f32 %v98, 0.5
      %v100 = vmul.f32 %v98, 0.70710677
      %v101 = vmul.f32 %v100, %v100
      %v102 = vmin.f32 16.0, %v101
      %v103 = vmul.f32 %v102, 2.1237322e-06
      %v104 = vadd.f32 %v103, 0.00028619796
      %v105 = vmul.f32 %v102, %v104
      %v106 = vadd.f32 %v105, 0.0036580483
      %v107 = vmul.f32 %v102, %v106
      %v108 = vadd.f32 %v107, 0.05243302
      %v109 = vmul.f32 %v102, %v108
      %v110 = vadd.f32 %v109, 0.18741608
      %v111 = vmul.f32 %v102, %v110
      %v112 = vadd.f32 %v111, 1.1283791
      %v113 = vmul.f32 %v100, %v112
      %v114 = vmul.f32 %v102, 3.8918573e-05
      %v115 = vadd.f32 %v114, 0.001143296
      %v116 = vmul.f32 %v102, %v115
      %v117 = vadd.f32 %v116, 0.014752088
      %v118 = vmul.f32 %v102, %v117
      %v119 = vadd.f32 %v118, 0.112945676
      %v120 = vmul.f32 %v102, %v119
      %v121 = vadd.f32 %v120, 0.4994258
      %v122 = vmul.f32 %v102, %v121
      %v123 = vadd.f32 %v122, 1.0
      %v124 = vrcp.pop %v123
      %v125 = vmul.f32 %v123, %v124
      %v126 = vsub.f32 1.0, %v125
      %v127 = vmul.f32 %v124, %v126
      %v128 = vadd.f32 %v124, %v127
      %vm129 = vweird.f32 %v123
      %vm130 = vweird.f32 %v124
      %vm131 = vmor %vm129, %vm130
      %v132 = vsel %vm131, %v124, %v128
      %v133 = vand.u32 2147483647, %v123
      %vm134 = vcmp.eq.f32.partialorder %v133, 8.507059e+37
      %v135 = vand.u32 %v123, 2147483648
      %v136 = vor.u32 1.1754944e-38, %v135
      %v137 = vsel %vm134, %v136, %v132
      %v138 = vmul.f32 %v113, %v137
      %v139 = vmin.f32 %v138, 1.0
      %v140 = vmax.f32 %v139, -1.0
      %v141 = vadd.f32 %v140, 1.0
      %v142 = vmul.f32 %v99, %v141
      %143 = vst [vmem:[#allocation8] sm:$0xff] %v142
    $region29: #{tpu_custom_call.1} parent=1 // pred_fallthru
      _
    // Predicated region
    $region30: #{tpu_custom_call.1} parent=1 // pred_check
      _
    $region31: #{tpu_custom_call.1} parent=1 // pred_check_branch
      %145 = sbr.rel (0) target = $region33
    $region32: #{tpu_custom_call.1} parent=1 // pred_region
      %147 = vsyncadd [#allocation5], 0
      %s149 = sshll.u32 [#allocation8], 4
      %s150 = int_to_ptr.vmem [resolvable:$true] %s149
      %s151 = sshll.u32 %s3, 4
      %s152 = int_to_ptr.hbm [resolvable:$true] %s151
      %154 = dma.vmem_to_hbm [thread:$0]  %s150, 128, %s152, [#allocation5]
    $region33: #{tpu_custom_call.1} parent=1 // pred_fallthru
      _
    // Predicated region
    $region34: #{tpu_custom_call.1} parent=1 // pred_check
      _
    $region35: #{tpu_custom_call.1} parent=1 // pred_check_branch
      %156 = sbr.rel (0) target = $region37
    $region36: #{tpu_custom_call.1} parent=1 // pred_region
      %158 = dma.done [#allocation5], 128
    $region37: #{tpu_custom_call.1} parent=1 // pred_fallthru
      _
    %159 = vsyncpa [#allocation4], 1
    %160 = vsyncpa [#allocation7], 1
    %161 = vsyncpa [#allocation5], 1

</llo_original>
